<compile_context>
chip_gen: v5e
topology: v5e:2x2
jax: 0.10.0
libtpu: 0.0.40
codegen_flags: <defaults>
</compile_context>

<pallas_src>
import functools

import jax
import jax.numpy as jnp
from jax.experimental import pallas as pl
from jax.experimental.pallas import tpu as pltpu


def _round_up(x, m):
    return ((x + m - 1) // m) * m


def _vmem_capacity_bytes():
    """Physical VMEM of the current TPU generation, with a safe fallback."""
    try:
        cap = getattr(pltpu.get_tpu_info(), "vmem_capacity_bytes", None)
        if cap:
            return int(cap)
    except Exception:
        pass
    return 64 * 2**20  # v7x per-TensorCore size; safe lower bound everywhere


def _head_kernel(x_ref, w1_ref, b1_ref, w2_ref, b2_ref, o_ref, acc_ref):
    # Grid: (row tiles i [parallel], feature slabs j [arbitrary, innermost]).
    # x_ref:  (tm, Hp)  input rows (f32 or bf16; cast to bf16 on the VPU here)
    # w1_ref: (Hp, tk)  dense weight slab, stored (in, out) so we do x @ W1
    # b1_ref: (1, tk)   dense bias slab (f32, zero in padded columns)
    # w2_ref: (tk, Lp)  out_proj weight slab (Lp = 128-padded num_labels)
    # b2_ref: (1, Lp)   out_proj bias (f32, zero in padded columns)
    # o_ref:  (tm, Lp)  lane-dense output tile (written only on the last j)
    # acc_ref:(tm, Lp)  f32 accumulator scratch
    j = pl.program_id(1)

    @pl.when(j == 0)
    def _():
        acc_ref[...] = jnp.zeros_like(acc_ref)

    x = x_ref[...].astype(jnp.bfloat16)
    h = jnp.dot(x, w1_ref[...], preferred_element_type=jnp.float32)
    h = jnp.tanh(h + b1_ref[...])                      # f32 bias add + tanh
    acc_ref[...] += jnp.dot(h.astype(jnp.bfloat16), w2_ref[...],
                            preferred_element_type=jnp.float32)

    @pl.when(j == pl.num_programs(1) - 1)
    def _():
        o_ref[...] = (acc_ref[...] + b2_ref[...]).astype(o_ref.dtype)


@functools.partial(jax.jit, static_argnames=("tm",))
def classification_head(x, w1, b1, w2, b2, *, tm=512):
    """x: (batch, seq, hidden) -> (batch, seq, num_labels)."""
    batch, seq, hidden = x.shape
    num_labels = w2.shape[1]
    n_rows = batch * seq
    out_dtype = x.dtype

    # Lane-align the contraction (hidden) and output (labels) dims.
    hp = _round_up(hidden, 128)
    lp = _round_up(num_labels, 128)

    # ---- Row tiling: even 256-row chunks (MXU M-pass granularity).  Aim for
    # >= 4 grid steps when there is enough work (>= 2 per v7x core and a
    # 4-deep pipeline on single-core v5e/v6e); tiny inputs get one 16-aligned
    # tile (native bf16 sublane tile, never below 16 rows).
    chunk = 256
    rows16 = _round_up(n_rows, 16)
    if rows16 <= chunk:
        tm_eff = rows16
    else:
        n_chunks = pl.cdiv(n_rows, chunk)
        max_units = max(1, tm // chunk)
        min_steps = min(n_chunks, 4)
        tm_units = max(1, min(max_units, n_chunks // min_steps))
        tm_eff = tm_units * chunk
    n_pad = _round_up(n_rows, tm_eff)
    ni = n_pad // tm_eff

    # ---- Feature (W1 output / 2nd-matmul contraction) tiling: keep the whole
    # weight set resident + single-buffered when it fits comfortably in VMEM;
    # otherwise stream 128-aligned slabs (double-buffered for prefetch) and
    # accumulate into the (tm, Lp) f32 scratch.
    vmem_cap = _vmem_capacity_bytes()
    weight_budget = int(0.45 * vmem_cap)
    if 2 * hp * (hp + lp) <= weight_budget:          # bf16, single-buffered
        tk = hp
    else:
        per_col = 2 * 2 * (hp + lp)                  # bf16, 2 buffers, per col
        tk_max = max(128, (weight_budget // per_col) // 128 * 128)
        m = hp // 128
        d_best = 1
        for d in range(1, m + 1):                    # tk must divide hp
            if m % d == 0 and 128 * d <= tk_max:
                d_best = d
        tk = 128 * d_best
    nj = hp // tk

    # ---- Operands.  Skip the extra HBM pass over x when no padding is needed
    # (the f32->bf16 cast happens on the VPU inside the kernel); otherwise
    # cast to bf16 before padding so the pad writes half the bytes.
    x2d = x.reshape(n_rows, hidden)
    if hp == hidden and n_pad == n_rows:
        x_in = x2d
    else:
        x_in = jnp.pad(x2d.astype(jnp.bfloat16),
                       ((0, n_pad - n_rows), (0, hp - hidden)))
    w1_bf = jnp.pad(w1, ((0, hp - hidden), (0, hp - hidden))).astype(jnp.bfloat16)
    w2_bf = jnp.pad(w2, ((0, hp - hidden), (0, lp - num_labels))).astype(jnp.bfloat16)
    b1_2d = jnp.pad(b1, (0, hp - hidden)).reshape(1, hp).astype(jnp.float32)
    b2_2d = jnp.pad(b2, (0, lp - num_labels)).reshape(1, lp).astype(jnp.float32)

    # Invariant operands -> single VMEM buffer; streamed slabs keep 2 buffers.
    w_buf = pl.Buffered(1) if nj == 1 else pl.Buffered(2)

    # ---- VMEM limit: ~2x a rough working-set estimate, capped at 85% of the
    # current generation's physical VMEM (v7x has only 64 MiB per TensorCore).
    x_bytes = jnp.dtype(x_in.dtype).itemsize
    out_bytes = jnp.dtype(out_dtype).itemsize
    w_bufs = 1 if nj == 1 else 2
    est = (2 * tm_eff * hp * x_bytes              # x tiles (double-buffered)
           + 2 * tm_eff * lp * out_bytes          # output tiles
           + w_bufs * (hp * tk + tk * lp) * 2     # weight slabs (bf16)
           + 2 * 8 * (tk + lp) * 4                # biases (sublane-padded)
           + tm_eff * lp * 4                      # f32 accumulator scratch
           + 2 * tm_eff * tk * 4)                 # f32 intermediates (h, ...)
    vmem_limit = int(max(32 * 2**20, min(2 * est, int(0.85 * vmem_cap))))

    # ---- Advisory cost estimate (helps XLA schedule around the custom call).
    w_reads = 1 if nj == 1 else ni
    cost = pl.CostEstimate(
        flops=int(2 * n_pad * hp * (hp + lp)),
        transcendentals=int(n_pad * hp),
        bytes_accessed=int(n_pad * hp * x_bytes + n_pad * lp * out_bytes
                           + w_reads * 2 * hp * (hp + lp) + 4 * (hp + lp)))

    out = pl.pallas_call(
        _head_kernel,
        out_shape=jax.ShapeDtypeStruct((n_pad, lp), out_dtype),
        grid_spec=pltpu.PrefetchScalarGridSpec(
            num_scalar_prefetch=0,
            grid=(ni, nj),
            in_specs=[
                pl.BlockSpec((tm_eff, hp), lambda i, j: (i, 0)),        # x tile
                pl.BlockSpec((hp, tk), lambda i, j: (0, j),
                             pipeline_mode=w_buf),                      # W1 slab
                pl.BlockSpec((1, tk), lambda i, j: (0, j),
                             pipeline_mode=w_buf),                      # b1 slab
                pl.BlockSpec((tk, lp), lambda i, j: (j, 0),
                             pipeline_mode=w_buf),                      # W2 slab
                pl.BlockSpec((1, lp), lambda i, j: (0, 0),
                             pipeline_mode=pl.Buffered(1)),             # b2
            ],
            out_specs=pl.BlockSpec((tm_eff, lp), lambda i, j: (i, 0)),
            scratch_shapes=[pltpu.VMEM((tm_eff, lp), jnp.float32)],
        ),
        compiler_params=pltpu.CompilerParams(
            dimension_semantics=("parallel", "arbitrary"),
            vmem_limit_bytes=vmem_limit),
        cost_estimate=cost,
    )(x_in, w1_bf, b1_2d, w2_bf, b2_2d)

    out = out[:n_rows, :num_labels]
    return out.reshape(batch, seq, num_labels)


def init_params(key, hidden_size, num_labels, dtype=jnp.float32):
    """Deterministic synthetic parameters (shapes match the PyTorch module).

    PyTorch nn.Linear stores weight as (out, in); we store the transpose
    (in, out) so the kernel computes x @ W directly.
    """
    k1, k2, k3, k4 = jax.random.split(key, 4)
    scale1 = 1.0 / jnp.sqrt(hidden_size)
    w1 = jax.random.uniform(k1, (hidden_size, hidden_size), dtype,
                            minval=-scale1, maxval=scale1)
    b1 = jax.random.uniform(k2, (hidden_size,), dtype,
                            minval=-scale1, maxval=scale1)
    w2 = jax.random.uniform(k3, (hidden_size, num_labels), dtype,
                            minval=-scale1, maxval=scale1)
    b2 = jax.random.uniform(k4, (num_labels,), dtype,
                            minval=-scale1, maxval=scale1)
    return w1, b1, w2, b2


def _reference_f32(x, w1, b1, w2, b2):
    h = jnp.tanh(x @ w1 + b1)
    return h @ w2 + b2


def _reference_bf16(x, w1, b1, w2, b2):
    # Mirrors the kernel's cast points: bf16 matmul inputs, f32 accumulation.
    xb = x.astype(jnp.bfloat16)
    h = jnp.dot(xb, w1.astype(jnp.bfloat16),
                preferred_element_type=jnp.float32) + b1
    h = jnp.tanh(h)
    y = jnp.dot(h.astype(jnp.bfloat16), w2.astype(jnp.bfloat16),
                preferred_element_type=jnp.float32) + b2
    return y


def _check(batch, seq, hidden, num_labels, seed):
    key = jax.random.PRNGKey(seed)
    kx, kp = jax.random.split(key)
    x = jax.random.normal(kx, (batch, seq, hidden), dtype=jnp.float32)
    w1, b1, w2, b2 = init_params(kp, hidden, num_labels)

    out = classification_head(x, w1, b1, w2, b2)
    out = jax.block_until_ready(out)
    assert out.shape == (batch, seq, num_labels)

    x2d = x.reshape(-1, hidden)
    # Check against a reference with the same bf16 cast points (tight).
    ref_bf = _reference_bf16(x2d, w1, b1, w2, b2).reshape(batch, seq, num_labels)
    assert jnp.allclose(out, ref_bf, atol=1e-2, rtol=1e-2), "mismatch vs bf16 reference"
    # Check against the pure-f32 reference (loose: bf16 input rounding).
    ref_f32 = _reference_f32(x2d, w1, b1, w2, b2).reshape(batch, seq, num_labels)
    assert jnp.allclose(out, ref_f32, atol=5e-2, rtol=5e-2), "mismatch vs f32 reference"


if __name__ == "__main__":
    key = jax.random.PRNGKey(0)

    # Small canonical shape (single grid step).
    _check(batch=2, seq=8, hidden=32, num_labels=4, seed=0)

    # Slightly larger shape: exercises multi-tile row grid, row padding, and
    # 128-padded label columns.
    _check(batch=4, seq=160, hidden=256, num_labels=3, seed=1)

    print("KERNEL_OK")
</pallas_src>

<mosaic_0001>
module attributes {stable_mosaic.version = 11 : i64} {
  func.func @_head_kernel(%arg0: i32, %arg1: i32, %arg2: memref<16x128xbf16, #tpu.memory_space<vmem>>, %arg3: memref<128x128xbf16, #tpu.memory_space<vmem>>, %arg4: memref<1x128xf32, #tpu.memory_space<vmem>>, %arg5: memref<128x128xbf16, #tpu.memory_space<vmem>>, %arg6: memref<1x128xf32, #tpu.memory_space<vmem>>, %arg7: memref<16x128xf32, #tpu.memory_space<vmem>>, %arg8: memref<16x128xf32, #tpu.memory_space<vmem>>) attributes {dimension_semantics = [#tpu.dimension_semantics<parallel>, #tpu.dimension_semantics<arbitrary>], iteration_bounds = array<i64: 1, 1>, scalar_prefetch = 0 : i64, scratch_operands = 1 : i64, tpu.core_type = #tpu.core_type<tc>, window_params = [{transform_indices = @transform_0, window_bounds = array<i64: 16, 128>}, {pipeline_mode = #tpu.pipeline_mode<synchronous>, transform_indices = @transform_1, window_bounds = array<i64: 128, 128>}, {pipeline_mode = #tpu.pipeline_mode<synchronous>, transform_indices = @transform_2, window_bounds = array<i64: 1, 128>}, {pipeline_mode = #tpu.pipeline_mode<synchronous>, transform_indices = @transform_3, window_bounds = array<i64: 128, 128>}, {pipeline_mode = #tpu.pipeline_mode<synchronous>, transform_indices = @transform_4, window_bounds = array<i64: 1, 128>}, {transform_indices = @transform_5, window_bounds = array<i64: 16, 128>}]} {
    %c0_i32 = arith.constant 0 : i32
    %0 = arith.cmpi eq, %arg1, %c0_i32 : i32
    %1 = arith.extui %0 : i1 to i32
    %c0_i32_0 = arith.constant 0 : i32
    %2 = arith.cmpi ne, %1, %c0_i32_0 : i32
    scf.if %2 {
      %cst_15 = arith.constant 0.000000e+00 : f32
      %19 = vector.broadcast %cst_15 : f32 to vector<16x128xf32>
      %c0_16 = arith.constant 0 : index
      %c0_17 = arith.constant 0 : index
      %20 = vector.load %arg8[%c0_16, %c0_17] : memref<16x128xf32, #tpu.memory_space<vmem>>, vector<16x128xf32>
      tpu.vector_store %arg8[%c0_16, %c0_17], %19 {strides = array<i32>} : memref<16x128xf32, #tpu.memory_space<vmem>>, vector<16x128xf32>,
    } else {
    }
    %c0 = arith.constant 0 : index
    %c0_1 = arith.constant 0 : index
    %3 = vector.load %arg2[%c0, %c0_1] : memref<16x128xbf16, #tpu.memory_space<vmem>>, vector<16x128xbf16>
    %c0_2 = arith.constant 0 : index
    %c0_3 = arith.constant 0 : index
    %4 = vector.load %arg3[%c0_2, %c0_3] : memref<128x128xbf16, #tpu.memory_space<vmem>>, vector<128x128xbf16>
    %cst = arith.constant dense<0.000000e+00> : vector<16x128xf32>
    %5 = tpu.matmul %3, %4, %cst {dimension_numbers = #tpu.dot_dimension_numbers<[1], [0], [0], [1], [0, 0, 1, 1], [], []>} : vector<16x128xbf16>, vector<128x128xbf16>, vector<16x128xf32> -> vector<16x128xf32>
    %c0_4 = arith.constant 0 : index
    %c0_5 = arith.constant 0 : index
    %6 = vector.load %arg4[%c0_4, %c0_5] : memref<1x128xf32, #tpu.memory_space<vmem>>, vector<1x128xf32>
    %7 = vector.broadcast %6 : vector<1x128xf32> to vector<16x128xf32>
    %8 = arith.addf %5, %7 : vector<16x128xf32>
    %9 = math.tanh %8 : vector<16x128xf32>
    %c0_6 = arith.constant 0 : index
    %c0_7 = arith.constant 0 : index
    %10 = vector.load %arg8[%c0_6, %c0_7] : memref<16x128xf32, #tpu.memory_space<vmem>>, vector<16x128xf32>
    %11 = arith.truncf %9 : vector<16x128xf32> to vector<16x128xbf16>
    %c0_8 = arith.constant 0 : index
    %c0_9 = arith.constant 0 : index
    %12 = vector.load %arg5[%c0_8, %c0_9] : memref<128x128xbf16, #tpu.memory_space<vmem>>, vector<128x128xbf16>
    %cst_10 = arith.constant dense<0.000000e+00> : vector<16x128xf32>
    %13 = tpu.matmul %11, %12, %cst_10 {dimension_numbers = #tpu.dot_dimension_numbers<[1], [0], [0], [1], [0, 0, 1, 1], [], []>} : vector<16x128xbf16>, vector<128x128xbf16>, vector<16x128xf32> -> vector<16x128xf32>
    %14 = arith.addf %10, %13 : vector<16x128xf32>
    %c0_11 = arith.constant 0 : index
    %c0_12 = arith.constant 0 : index
    %15 = vector.load %arg8[%c0_11, %c0_12] : memref<16x128xf32, #tpu.memory_space<vmem>>, vector<16x128xf32>
    tpu.vector_store %arg8[%c0_11, %c0_12], %14 {strides = array<i32>} : memref<16x128xf32, #tpu.memory_space<vmem>>, vector<16x128xf32>,
    %c0_i32_13 = arith.constant 0 : i32
    %16 = arith.cmpi eq, %arg1, %c0_i32_13 : i32
    %17 = arith.extui %16 : i1 to i32
    %c0_i32_14 = arith.constant 0 : i32
    %18 = arith.cmpi ne, %17, %c0_i32_14 : i32
    scf.if %18 {
      %c0_15 = arith.constant 0 : index
      %c0_16 = arith.constant 0 : index
      %19 = vector.load %arg8[%c0_15, %c0_16] : memref<16x128xf32, #tpu.memory_space<vmem>>, vector<16x128xf32>
      %c0_17 = arith.constant 0 : index
      %c0_18 = arith.constant 0 : index
      %20 = vector.load %arg6[%c0_17, %c0_18] : memref<1x128xf32, #tpu.memory_space<vmem>>, vector<1x128xf32>
      %21 = vector.broadcast %20 : vector<1x128xf32> to vector<16x128xf32>
      %22 = arith.addf %19, %21 : vector<16x128xf32>
      %c0_19 = arith.constant 0 : index
      %c0_20 = arith.constant 0 : index
      %23 = vector.load %arg7[%c0_19, %c0_20] : memref<16x128xf32, #tpu.memory_space<vmem>>, vector<16x128xf32>
      tpu.vector_store %arg7[%c0_19, %c0_20], %22 {strides = array<i32>} : memref<16x128xf32, #tpu.memory_space<vmem>>, vector<16x128xf32>,
    } else {
    }
    return
  }
  func.func @transform_0(%arg0: i32, %arg1: i32) -> (i32, i32) {
    %c0_i32 = arith.constant 0 : i32
    %c0_i32_0 = arith.constant 0 : i32
    return %arg0, %c0_i32 : i32, i32
  }
  func.func @transform_1(%arg0: i32, %arg1: i32) -> (i32, i32) {
    %c0_i32 = arith.constant 0 : i32
    %c0_i32_0 = arith.constant 0 : i32
    return %c0_i32, %arg1 : i32, i32
  }
  func.func @transform_2(%arg0: i32, %arg1: i32) -> (i32, i32) {
    %c0_i32 = arith.constant 0 : i32
    %c0_i32_0 = arith.constant 0 : i32
    return %c0_i32, %arg1 : i32, i32
  }
  func.func @transform_3(%arg0: i32, %arg1: i32) -> (i32, i32) {
    %c0_i32 = arith.constant 0 : i32
    %c0_i32_0 = arith.constant 0 : i32
    return %arg1, %c0_i32 : i32, i32
  }
  func.func @transform_4(%arg0: i32, %arg1: i32) -> (i32, i32) {
    %c0_i32 = arith.constant 0 : i32
    %c0_i32_0 = arith.constant 0 : i32
    %c0_i32_1 = arith.constant 0 : i32
    return %c0_i32, %c0_i32_0 : i32, i32
  }
  func.func @transform_5(%arg0: i32, %arg1: i32) -> (i32, i32) {
    %c0_i32 = arith.constant 0 : i32
    %c0_i32_0 = arith.constant 0 : i32
    return %arg0, %c0_i32 : i32, i32
  }
}

</mosaic_0001>

<llo_original>
// kernel: classification_head.1
$region0: #{classification_head.1}
  #allocation0 [shape = 'u32[]', space=smem, size = 0x4, offset = 0x4, fixed_abs, tag = 'smem constant byte address 0x4 - core index']
  #allocation1 [shape = 'u32[72,128]{1,0:T(1,128)}', space=vmem, size = 0x9000, scoped, tag = 'internal scratch']
  #allocation2 [shape = 'f32[16,128]{1,0:T(8,128)}', space=vmem, size = 0x2000, scoped, tag = 'scratch operand']
  %s0 = inlined_call_operand.vmem [shape: bf16[16,128], index: 0, kind: input, shape index: {}]
  %s1 = inlined_call_operand.vmem [shape: bf16[128,128], index: 1, kind: input, shape index: {}]
  %s2 = inlined_call_operand.vmem [shape: f32[1,128], index: 2, kind: input, shape index: {}]
  %s3 = inlined_call_operand.vmem [shape: bf16[128,128], index: 3, kind: input, shape index: {}]
  %s4 = inlined_call_operand.vmem [shape: f32[1,128], index: 4, kind: input, shape index: {}]
  %s5 = inlined_call_operand.vmem [shape: f32[16,128], index: 5, kind: output, shape index: {}]
  %s6 = sld [smem:[#allocation0]]
  $region38: #{classification_head.1} parent=0
    _
  %s8 = ssub.s32 1, %s6
  %s9 = scalar_select 0, %s8, %s6
  // Predicated region
  $region2: #{classification_head.1} parent=0 // pred_check
    _
  $region3: #{classification_head.1} parent=0 // pred_check_branch
    %11 = sbr.rel (0) target = $region5
  $region4: #{classification_head.1} parent=0 // pred_region
    _
  $region5: #{classification_head.1} parent=0 // pred_fallthru
    _
  // Predicated region
  $region6: #{classification_head.1} parent=0 // pred_check
    _
  $region7: #{classification_head.1} parent=0 // pred_check_branch
    %13 = sbr.rel (0) target = $region9
  $region8: #{classification_head.1} parent=0 // pred_region
    _
  $region9: #{classification_head.1} parent=0 // pred_fallthru
    _
  // Predicated region
  $region10: #{classification_head.1} parent=0 // pred_check
    _
  $region11: #{classification_head.1} parent=0 // pred_check_branch
    %15 = sbr.rel (0) target = $region13
  $region12: #{classification_head.1} parent=0 // pred_region
    _
  $region13: #{classification_head.1} parent=0 // pred_fallthru
    _
  // Predicated region
  $region14: #{classification_head.1} parent=0 // pred_check
    _
  $region15: #{classification_head.1} parent=0 // pred_check_branch
    %17 = sbr.rel (0) target = $region17
  $region16: #{classification_head.1} parent=0 // pred_region
    _
  $region17: #{classification_head.1} parent=0 // pred_fallthru
    _
  // Predicated region
  $region18: #{classification_head.1} parent=0 // pred_check
    _
  $region19: #{classification_head.1} parent=0 // pred_check_branch
    %19 = sbr.rel (0) target = $region21
  $region20: #{classification_head.1} parent=0 // pred_region
    _
  $region21: #{classification_head.1} parent=0 // pred_fallthru
    _
  %p20 = scmp.eq.s32.totalorder 0, 0
  // Predicated region
  $region22: #{classification_head.1} parent=0 // pred_check
    %p21 = pneg %p20
  $region23: #{classification_head.1} parent=0 // pred_check_branch
    %23 = sbr.rel (%p21) target = $region25
  $region24: #{classification_head.1} parent=0 // pred_region
    %24 = vst [vmem:[#allocation2] sm:$0xff] 0.0
    %25 = vst [vmem:[#allocation2 + $0x8] sm:$0xff] 0.0
  $region25: #{classification_head.1} parent=0 // pred_fallthru
    _
  %v26 = vld [vmem:[%s0] sm:$0xf]
  %v27 = vld [vmem:[%s0 + $0x4] sm:$0xf]
  %v28 = vld [vmem:[%s1] sm:$0xf]
  %v29 = vld [vmem:[%s1 + $0x4] sm:$0xf]
  %v30 = vld [vmem:[%s1 + $0x8] sm:$0xf]
  %v31 = vld [vmem:[%s1 + $0xc] sm:$0xf]
  %v32 = vld [vmem:[%s1 + $0x10] sm:$0xf]
  %v33 = vld [vmem:[%s1 + $0x14] sm:$0xf]
  %v34 = vld [vmem:[%s1 + $0x18] sm:$0xf]
  %v35 = vld [vmem:[%s1 + $0x1c] sm:$0xf]
  %v36 = vld [vmem:[%s1 + $0x20] sm:$0xf]
  %v37 = vld [vmem:[%s1 + $0x24] sm:$0xf]
  %v38 = vld [vmem:[%s1 + $0x28] sm:$0xf]
  %v39 = vld [vmem:[%s1 + $0x2c] sm:$0xf]
  %v40 = vld [vmem:[%s1 + $0x30] sm:$0xf]
  %v41 = vld [vmem:[%s1 + $0x34] sm:$0xf]
  %v42 = vld [vmem:[%s1 + $0x38] sm:$0xf]
  %v43 = vld [vmem:[%s1 + $0x3c] sm:$0xf]
  %v44 = vld [vmem:[%s2] sm:$0x1]
  %v46 = vperm.slane %v44, 0
  %v50 = vunpack.c.l.b16 %v26
  %v51 = vunpack.c.l.b16 %v27
  %v52 = vpack.c.b16 %v51, %v50
  %v70 = vunpack.c.l.b16 %v28
  %v71 = vunpack.c.l.b16 %v29
  %v72 = vunpack.c.l.b16 %v30
  %v73 = vunpack.c.l.b16 %v31
  %v74 = vunpack.c.l.b16 %v32
  %v75 = vunpack.c.l.b16 %v33
  %v76 = vunpack.c.l.b16 %v34
  %v77 = vunpack.c.l.b16 %v35
  %v78 = vunpack.c.l.b16 %v36
  %v79 = vunpack.c.l.b16 %v37
  %v80 = vunpack.c.l.b16 %v38
  %v81 = vunpack.c.l.b16 %v39
  %v82 = vunpack.c.l.b16 %v40
  %v83 = vunpack.c.l.b16 %v41
  %v84 = vunpack.c.l.b16 %v42
  %v85 = vunpack.c.l.b16 %v43
  %v86 = vpack.c.b16 %v71, %v70
  %v87 = vpack.c.b16 %v73, %v72
  %v88 = vpack.c.b16 %v75, %v74
  %v89 = vpack.c.b16 %v77, %v76
  %v90 = vpack.c.b16 %v79, %v78
  %v91 = vpack.c.b16 %v81, %v80
  %v92 = vpack.c.b16 %v83, %v82
  %v93 = vpack.c.b16 %v85, %v84
  %102 = vmatpush.bf16.msra.mxu0 %v93
  %103 = vmatpush.bf16.msra.mxu0 %v92
  %104 = vmatpush.bf16.msra.mxu0 %v91
  %105 = vmatpush.bf16.msra.mxu0 %v90
  %106 = vmatpush.bf16.msra.mxu0 %v89
  %107 = vmatpush.bf16.msra.mxu0 %v88
  %108 = vmatpush.bf16.msra.mxu0 %v87
  %109 = vmatpush.bf16.msra.mxu0 %v86
  %110 = vmatmul.bf16.gmra.mxu0 %v52
  %v111 = vpop.f32.mrf.mxu0
  %v112 = vadd.f32 %v46, %v111
  %v113 = vpop.f32.mrf.mxu0
  %v114 = vadd.f32 %v46, %v113
  %115 = vdwg.mxu0
  %v116 = vtanh.pop %v112
  %v117 = vtanh.pop %v114
  %v118 = vld [vmem:[#allocation2] sm:$0xff]
  %v119 = vld [vmem:[#allocation2 + $0x8] sm:$0xff]
  %v120 = vpack.c.bf16 %v117, %v116
  %v121 = vld [vmem:[%s3] sm:$0xf]
  %v122 = vld [vmem:[%s3 + $0x4] sm:$0xf]
  %v123 = vld [vmem:[%s3 + $0x8] sm:$0xf]
  %v124 = vld [vmem:[%s3 + $0xc] sm:$0xf]
  %v125 = vld [vmem:[%s3 + $0x10] sm:$0xf]
  %v126 = vld [vmem:[%s3 + $0x14] sm:$0xf]
  %v127 = vld [vmem:[%s3 + $0x18] sm:$0xf]
  %v128 = vld [vmem:[%s3 + $0x1c] sm:$0xf]
  %v129 = vld [vmem:[%s3 + $0x20] sm:$0xf]
  %v130 = vld [vmem:[%s3 + $0x24] sm:$0xf]
  %v131 = vld [vmem:[%s3 + $0x28] sm:$0xf]
  %v132 = vld [vmem:[%s3 + $0x2c] sm:$0xf]
  %v133 = vld [vmem:[%s3 + $0x30] sm:$0xf]
  %v134 = vld [vmem:[%s3 + $0x34] sm:$0xf]
  %v135 = vld [vmem:[%s3 + $0x38] sm:$0xf]
  %v136 = vld [vmem:[%s3 + $0x3c] sm:$0xf]
  %v153 = vunpack.c.l.b16 %v121
  %v154 = vunpack.c.l.b16 %v122
  %v155 = vunpack.c.l.b16 %v123
  %v156 = vunpack.c.l.b16 %v124
  %v157 = vunpack.c.l.b16 %v125
  %v158 = vunpack.c.l.b16 %v126
  %v159 = vunpack.c.l.b16 %v127
  %v160 = vunpack.c.l.b16 %v128
  %v161 = vunpack.c.l.b16 %v129
  %v162 = vunpack.c.l.b16 %v130
  %v163 = vunpack.c.l.b16 %v131
  %v164 = vunpack.c.l.b16 %v132
  %v165 = vunpack.c.l.b16 %v133
  %v166 = vunpack.c.l.b16 %v134
  %v167 = vunpack.c.l.b16 %v135
  %v168 = vunpack.c.l.b16 %v136
  %v169 = vpack.c.b16 %v154, %v153
  %v170 = vpack.c.b16 %v156, %v155
  %v171 = vpack.c.b16 %v158, %v157
  %v172 = vpack.c.b16 %v160, %v159
  %v173 = vpack.c.b16 %v162, %v161
  %v174 = vpack.c.b16 %v164, %v163
  %v175 = vpack.c.b16 %v166, %v165
  %v176 = vpack.c.b16 %v168, %v167
  %185 = vmatpush.bf16.msra.mxu0 %v176
  %186 = vmatpush.bf16.msra.mxu0 %v175
  %187 = vmatpush.bf16.msra.mxu0 %v174
  %188 = vmatpush.bf16.msra.mxu0 %v173
  %189 = vmatpush.bf16.msra.mxu0 %v172
  %190 = vmatpush.bf16.msra.mxu0 %v171
  %191 = vmatpush.bf16.msra.mxu0 %v170
  %192 = vmatpush.bf16.msra.mxu0 %v169
  %193 = vmatmul.bf16.gmra.mxu0 %v120
  %v194 = vpop.f32.mrf.mxu0
  %v195 = vadd.f32 0.0, %v194
  %v196 = vpop.f32.mrf.mxu0
  %v197 = vadd.f32 0.0, %v196
  %198 = vdwg.mxu0
  %v199 = vadd.f32 %v118, %v195
  %v200 = vadd.f32 %v119, %v197
  %201 = vst [vmem:[#allocation2] sm:$0xff] %v199
  %202 = vst [vmem:[#allocation2 + $0x8] sm:$0xff] %v200
  // Predicated region
  $region26: #{classification_head.1} parent=0 // pred_check
    %p203 = pneg %p20
  $region27: #{classification_head.1} parent=0 // pred_check_branch
    %205 = sbr.rel (%p203) target = $region29
  $region28: #{classification_head.1} parent=0 // pred_region
    %v206 = vld [vmem:[#allocation2] sm:$0xff]
    %v207 = vld [vmem:[#allocation2 + $0x8] sm:$0xff]
    %v208 = vld [vmem:[%s4] sm:$0x1]
    %v210 = vperm.slane %v208, 0
    %v212 = vadd.f32 %v206, %v210
    %v213 = vadd.f32 %v207, %v210
    %214 = vst [vmem:[%s5] sm:$0xff] %v212
    %215 = vst [vmem:[%s5 + $0x8] sm:$0xff] %v213
  $region29: #{classification_head.1} parent=0 // pred_fallthru
    _
  // Predicated region
  $region30: #{classification_head.1} parent=0 // pred_check
    _
  $region31: #{classification_head.1} parent=0 // pred_check_branch
    %217 = sbr.rel (0) target = $region33
  $region32: #{classification_head.1} parent=0 // pred_region
    _
  $region33: #{classification_head.1} parent=0 // pred_fallthru
    _
  // Predicated region
  $region34: #{classification_head.1} parent=0 // pred_check
    _
  $region35: #{classification_head.1} parent=0 // pred_check_branch
    %219 = sbr.rel (0) target = $region37
  $region36: #{classification_head.1} parent=0 // pred_region
    _
  $region37: #{classification_head.1} parent=0 // pred_fallthru
    _

</llo_original>
